<compile_context>
chip_gen: v6e
topology: v6e:2x2x1
jax: 0.10.0
libtpu: 0.0.40
codegen_flags: <defaults>
</compile_context>

<pallas_src>
import functools

import jax
import jax.numpy as jnp
from jax import lax
from jax.experimental import pallas as pl
from jax.experimental.pallas import tpu as pltpu


def _contrastive_loss_kernel(o1_ref, o2_ref, t_ref, out_ref, *,
                             margin, n_rows, mask_edge):
    tb = o1_ref.shape[0]

    o1 = o1_ref[...].astype(jnp.float32)           # [TB, D]
    o2 = o2_ref[...].astype(jnp.float32)           # [TB, D]
    t = t_ref[...].astype(jnp.float32)             # [TB, 1]

    # cosine_sim = row-wise sum over the embedding (lane) axis -> XLU reduce.
    sim = jnp.sum(o1 * o2, axis=1, keepdims=True)  # [TB, 1]
    hinge = jnp.maximum(margin - sim, 0.0)
    losses = 0.5 * ((1.0 - t) * sim * sim + t * hinge * hinge)  # [TB, 1]

    if mask_edge:
        # Mask rows past the true batch size (edge block of a non-divisible
        # batch). Only emitted when B % TB != 0.
        row = pl.program_id(0) * tb + lax.broadcasted_iota(jnp.int32, (tb, 1), 0)
        losses = jnp.where(row < n_rows, losses, 0.0)

    partial = jnp.sum(losses)                      # scalar per row-tile
    # Lane-dense, fully unmasked store: every element of this block's (8,128)
    # tile holds the block's partial sum; the wrapper reads [0, 0] of each.
    out_ref[...] = jnp.full(out_ref.shape, partial, jnp.float32)


def _round_up(x, m):
    return ((x + m - 1) // m) * m


def _vmem_budget():
    """(vmem_limit_bytes, working_set_budget_bytes) per chip generation."""
    vmem_cap = 64 * 1024 * 1024            # conservative default (v7x per-TC)
    try:
        info = pltpu.get_tpu_info()
        vmem_cap = int(getattr(info, "vmem_capacity_bytes", vmem_cap))
    except Exception:
        pass
    if vmem_cap >= 96 * 1024 * 1024:       # v5e / v6e: 128 MiB physical VMEM
        return 64 * 1024 * 1024, 40 * 1024 * 1024
    # v7x: 64 MiB per TensorCore -> stay well inside it.
    return 48 * 1024 * 1024, 24 * 1024 * 1024


def _pick_block_rows(batch, dim, itemsize, budget):
    """Largest sublane-aligned row tile whose VMEM working set fits `budget`."""
    d_pad = _round_up(dim, 128)            # lane padding of each VMEM block
    # 2 inputs x 2 pipeline buffers, held in the input dtype ...
    per_row = 4 * d_pad * itemsize
    # ... + in-kernel f32 temporaries: 2 casts + product when inputs are
    #     sub-32-bit, otherwise just the product.
    per_row += d_pad * 4 * (3 if itemsize < 4 else 1)
    # ... + (TB,1) f32 target column, lane-padded to 512 B/row, x2 buffers.
    per_row += 2 * 512
    tb = max(8, budget // per_row)
    tb -= tb % 8                           # sublane alignment
    # Guarantee >= 2 grid blocks so the "parallel" batch axis can be sharded
    # across both v7x TensorCores (elsewhere: one extra grid step, negligible).
    half = _round_up(pl.cdiv(batch, 2), 8)
    b8 = _round_up(batch, 8)
    return max(8, min(tb, half, b8))


def contrastive_loss(output1, output2, target, margin, block_rows=None):
    """output1, output2: [B, D]; target: [B] (0/1). Returns scalar f32 loss."""
    B, D = output1.shape
    itemsize = jnp.dtype(output1.dtype).itemsize
    vmem_limit, budget = _vmem_budget()
    tb = block_rows if block_rows is not None else _pick_block_rows(
        B, D, itemsize, budget)
    g = pl.cdiv(B, tb)
    mask_edge = (B % tb) != 0

    t = target.astype(jnp.float32).reshape(B, 1)

    cost = pl.CostEstimate(
        flops=3 * B * D + 8 * B,
        transcendentals=0,
        bytes_accessed=2 * B * D * itemsize + B * 4 + g * 8 * 128 * 4,
    )

    partials = pl.pallas_call(
        functools.partial(_contrastive_loss_kernel,
                          margin=float(margin), n_rows=B, mask_edge=mask_edge),
        out_shape=jax.ShapeDtypeStruct((g, 8, 128), jnp.float32),
        grid=(g,),
        in_specs=[
            pl.BlockSpec((tb, D), lambda i: (i, 0)),
            pl.BlockSpec((tb, D), lambda i: (i, 0)),
            pl.BlockSpec((tb, 1), lambda i: (i, 0)),
        ],
        out_specs=pl.BlockSpec((1, 8, 128), lambda i: (i, 0, 0)),
        compiler_params=pltpu.CompilerParams(
            dimension_semantics=("parallel",),
            vmem_limit_bytes=vmem_limit,
        ),
        cost_estimate=cost,
    )(output1, output2, t)

    # Every element of block i equals block i's partial sum -> exact reduce.
    return jnp.sum(partials[:, 0, 0])


def contrastive_loss_ref(output1, output2, target, margin):
    """Pure-JAX reference mirroring the PyTorch module."""
    o1 = output1.astype(jnp.float32)
    o2 = output2.astype(jnp.float32)
    t = target.astype(jnp.float32)
    sim = jnp.sum(o1 * o2, axis=1)
    losses = 0.5 * ((1.0 - t) * sim**2 + t * jnp.maximum(margin - sim, 0.0) ** 2)
    return jnp.sum(losses)


if __name__ == "__main__":
    key = jax.random.PRNGKey(0)
    k1, k2, k3, k4, k5, k6, k7, k8, k9 = jax.random.split(key, 9)

    # Test 1: toy shape consistent with the module (batch=8, embedding dim=32).
    B, D, margin = 8, 32, 1.0
    o1 = jax.random.normal(k1, (B, D), dtype=jnp.float32)
    o2 = jax.random.normal(k2, (B, D), dtype=jnp.float32)
    tg = jax.random.bernoulli(k3, 0.5, (B,)).astype(jnp.int32)

    loss = jax.block_until_ready(contrastive_loss(o1, o2, tg, margin))
    ref = contrastive_loss_ref(o1, o2, tg, margin)
    assert jnp.allclose(loss, ref, rtol=1e-5, atol=1e-5), (loss, ref)

    # Test 2: non-divisible batch, auto block sizing (>=2 blocks, edge mask).
    B2, D2, margin2 = 300, 128, 0.5
    o1b = jax.random.normal(k4, (B2, D2), dtype=jnp.float32)
    o2b = jax.random.normal(k5, (B2, D2), dtype=jnp.float32)
    tgb = jax.random.bernoulli(k6, 0.5, (B2,)).astype(jnp.int32)

    loss2 = jax.block_until_ready(contrastive_loss(o1b, o2b, tgb, margin2))
    ref2 = contrastive_loss_ref(o1b, o2b, tgb, margin2)
    assert jnp.allclose(loss2, ref2, rtol=1e-4, atol=1e-3), (loss2, ref2)

    # Test 3: bf16 inputs with D not a multiple of 128 (lane padding + in-kernel
    # f32 cast path) and an explicit multi-block grid.
    B3, D3, margin3 = 40, 96, 0.25
    o1c = jax.random.normal(k7, (B3, D3), dtype=jnp.bfloat16)
    o2c = jax.random.normal(k8, (B3, D3), dtype=jnp.bfloat16)
    tgc = jax.random.bernoulli(k9, 0.5, (B3,)).astype(jnp.int32)

    loss3 = jax.block_until_ready(
        contrastive_loss(o1c, o2c, tgc, margin3, block_rows=16))
    ref3 = contrastive_loss_ref(o1c, o2c, tgc, margin3)
    assert jnp.allclose(loss3, ref3, rtol=1e-3, atol=1e-3), (loss3, ref3)

    print("KERNEL_OK")
</pallas_src>

<mosaic_0001>
module attributes {stable_mosaic.version = 11 : i64} {
  func.func @_contrastive_loss_kernel(%arg0: i32, %arg1: memref<8x32xf32, #tpu.memory_space<vmem>>, %arg2: memref<8x32xf32, #tpu.memory_space<vmem>>, %arg3: memref<8x1xf32, #tpu.memory_space<vmem>>, %arg4: memref<1x8x128xf32, #tpu.memory_space<vmem>>) attributes {dimension_semantics = [#tpu.dimension_semantics<parallel>], iteration_bounds = array<i64: 1>, scalar_prefetch = 0 : i64, scratch_operands = 0 : i64, tpu.core_type = #tpu.core_type<tc>, window_params = [{transform_indices = @transform_0, window_bounds = array<i64: 8, 32>}, {transform_indices = @transform_1, window_bounds = array<i64: 8, 32>}, {transform_indices = @transform_2, window_bounds = array<i64: 8, 1>}, {transform_indices = @transform_3, window_bounds = array<i64: 1, 8, 128>}]} {
    %c0 = arith.constant 0 : index
    %c0_0 = arith.constant 0 : index
    %0 = vector.load %arg1[%c0, %c0_0] : memref<8x32xf32, #tpu.memory_space<vmem>>, vector<8x32xf32>
    %c0_1 = arith.constant 0 : index
    %c0_2 = arith.constant 0 : index
    %1 = vector.load %arg2[%c0_1, %c0_2] : memref<8x32xf32, #tpu.memory_space<vmem>>, vector<8x32xf32>
    %c0_3 = arith.constant 0 : index
    %c0_4 = arith.constant 0 : index
    %2 = vector.load %arg3[%c0_3, %c0_4] : memref<8x1xf32, #tpu.memory_space<vmem>>, vector<8x1xf32>
    %3 = arith.mulf %0, %1 : vector<8x32xf32>
    %cst = arith.constant dense<0.000000e+00> : vector<8xf32>
    %4 = vector.multi_reduction <add>, %3, %cst [1] : vector<8x32xf32> to vector<8xf32>
    %5 = vector.shape_cast %4 : vector<8xf32> to vector<8x1xf32>
    %cst_5 = arith.constant 1.000000e+00 : f32
    %6 = vector.broadcast %cst_5 : f32 to vector<8x1xf32>
    %7 = arith.subf %6, %5 : vector<8x1xf32>
    %cst_6 = arith.constant 0.000000e+00 : f32
    %8 = vector.broadcast %cst_6 : f32 to vector<8x1xf32>
    %9 = arith.maximumf %7, %8 : vector<8x1xf32>
    %cst_7 = arith.constant 1.000000e+00 : f32
    %10 = vector.broadcast %cst_7 : f32 to vector<8x1xf32>
    %11 = arith.subf %10, %2 : vector<8x1xf32>
    %12 = arith.mulf %11, %5 : vector<8x1xf32>
    %13 = arith.mulf %12, %5 : vector<8x1xf32>
    %14 = arith.mulf %2, %9 : vector<8x1xf32>
    %15 = arith.mulf %14, %9 : vector<8x1xf32>
    %16 = arith.addf %13, %15 : vector<8x1xf32>
    %cst_8 = arith.constant 5.000000e-01 : f32
    %17 = vector.broadcast %cst_8 : f32 to vector<8x1xf32>
    %18 = arith.mulf %17, %16 : vector<8x1xf32>
    %19 = vector.shape_cast %18 : vector<8x1xf32> to vector<1x8x1xf32>
    %cst_9 = arith.constant dense<0.000000e+00> : vector<1xf32>
    %20 = vector.multi_reduction <add>, %19, %cst_9 [1, 2] : vector<1x8x1xf32> to vector<1xf32>
    %21 = vector.shape_cast %20 : vector<1xf32> to vector<1x1x1xf32>
    %22 = vector.extract %21[0, 0, 0] : f32 from vector<1x1x1xf32>
    %23 = vector.broadcast %22 : f32 to vector<1x8x128xf32>
    %c0_10 = arith.constant 0 : index
    %c0_11 = arith.constant 0 : index
    %c0_12 = arith.constant 0 : index
    %24 = vector.load %arg4[%c0_10, %c0_11, %c0_12] : memref<1x8x128xf32, #tpu.memory_space<vmem>>, vector<1x8x128xf32>
    tpu.vector_store %arg4[%c0_10, %c0_11, %c0_12], %23 {strides = array<i32>} : memref<1x8x128xf32, #tpu.memory_space<vmem>>, vector<1x8x128xf32>,
    return
  }
  func.func @transform_0(%arg0: i32) -> (i32, i32) {
    %c0_i32 = arith.constant 0 : i32
    %c0_i32_0 = arith.constant 0 : i32
    return %arg0, %c0_i32 : i32, i32
  }
  func.func @transform_1(%arg0: i32) -> (i32, i32) {
    %c0_i32 = arith.constant 0 : i32
    %c0_i32_0 = arith.constant 0 : i32
    return %arg0, %c0_i32 : i32, i32
  }
  func.func @transform_2(%arg0: i32) -> (i32, i32) {
    %c0_i32 = arith.constant 0 : i32
    %c0_i32_0 = arith.constant 0 : i32
    return %arg0, %c0_i32 : i32, i32
  }
  func.func @transform_3(%arg0: i32) -> (i32, i32, i32) {
    %c0_i32 = arith.constant 0 : i32
    %c0_i32_0 = arith.constant 0 : i32
    %c0_i32_1 = arith.constant 0 : i32
    return %arg0, %c0_i32, %c0_i32_0 : i32, i32, i32
  }
}

</mosaic_0001>

<llo_original>
// kernel: tpu_custom_call.1
$region0: #{tpu_custom_call.1}
  #allocation0 [shape = 'u32[]', space=smem, size = 0x4, offset = 0x4, fixed_abs, tag = 'smem constant byte address 0x4 - core index']
  #allocation1 [shape = 'u32[144,128]{1,0:T(1,128)}', space=vmem, size = 0x12000, scoped, tag = 'internal scratch']
  %s0 = inlined_call_operand.vmem [shape: f32[8,32], index: 0, kind: input, shape index: {}]
  %s1 = inlined_call_operand.hbm [shape: f32[8,32], index: 1, kind: input, shape index: {}]
  %s2 = inlined_call_operand.vmem [shape: f32[8,1], index: 2, kind: input, shape index: {}]
  %s3 = inlined_call_operand.hbm [shape: f32[1,8,128], index: 3, kind: output, shape index: {}]
  %s4 = sld [smem:[#allocation0]]
  $region26: #{tpu_custom_call.1} parent=0
    _
  %s6 = ssub.s32 1, %s4
  %s7 = scalar_select 0, %s6, %s4
  $region1: #{tpu_custom_call.1} parent=0
    #allocation2 [shape = 'u8[4096]{0}', space=vmem, size = 0x1000, scoped, tag = 'input window, operand 1, single buffered']
    #allocation3 [shape = 's32[1]{0}', space=sflag, size = 0x4, scoped, tag = 'scoped memory for tpu_custom_call.1']
    #allocation4 [shape = 's32[1]{0}', space=sflag, size = 0x4, scoped, tag = 'scoped memory for tpu_custom_call.1']
    #allocation5 [shape = 'u8[4096]{0}', space=vmem, size = 0x1000, scoped, tag = 'output window, operand 0, single buffered']
    %8 = vsyncpa [#allocation3], 0
    %9 = vsyncpa [#allocation4], 0
    // Predicated region
    $region2: #{tpu_custom_call.1} parent=1 // pred_check
      _
    $region3: #{tpu_custom_call.1} parent=1 // pred_check_branch
      %11 = sbr.rel (0) target = $region5
    $region4: #{tpu_custom_call.1} parent=1 // pred_region
      _
    $region5: #{tpu_custom_call.1} parent=1 // pred_fallthru
      _
    // Predicated region
    $region6: #{tpu_custom_call.1} parent=1 // pred_check
      _
    $region7: #{tpu_custom_call.1} parent=1 // pred_check_branch
      %13 = sbr.rel (0) target = $region9
    $region8: #{tpu_custom_call.1} parent=1 // pred_region
      %s15 = ssub.s32 128, 128
      %16 = vsyncadd [#allocation3], %s15
      %s18 = sshll.u32 [#allocation2], 4
      %s19 = int_to_ptr.vmem [resolvable:$true] %s18
      %21 = dma.hbm_to_vmem [thread:$0]  %s1, 128, %s19, [#allocation3]
    $region9: #{tpu_custom_call.1} parent=1 // pred_fallthru
      _
    // Predicated region
    $region10: #{tpu_custom_call.1} parent=1 // pred_check
      _
    $region11: #{tpu_custom_call.1} parent=1 // pred_check_branch
      %23 = sbr.rel (0) target = $region13
    $region12: #{tpu_custom_call.1} parent=1 // pred_region
      _
    $region13: #{tpu_custom_call.1} parent=1 // pred_fallthru
      _
    // Predicated region
    $region14: #{tpu_custom_call.1} parent=1 // pred_check
      _
    $region15: #{tpu_custom_call.1} parent=1 // pred_check_branch
      %25 = sbr.rel (0) target = $region17
    $region16: #{tpu_custom_call.1} parent=1 // pred_region
      %26 = dma.done [#allocation3], 128
    $region17: #{tpu_custom_call.1} parent=1 // pred_fallthru
      _
    %v27 = vld [vmem:[%s0] sm:$0xff]
    %v28 = vld [vmem:[#allocation2] sm:$0xff]
    %v29 = vld [vmem:[%s2] sm:$0xff]
    %v30 = vmul.f32 %v27, %v28
    %vm31 = vcmask 261120
    %v32 = vsel %vm31, %v30, 0.0
    %33 = vadd.xlane.f32.xlu0 %v32
    %v34 = vpop.xlane.xlu0 %33
    %v35 = vsub.f32 1.0, %v34
    %v36 = vmax.f32 %v35, 0.0
    %v37 = vsub.f32 1.0, %v29
    %v38 = vmul.f32 %v37, %v34
    %v39 = vmul.f32 %v38, %v34
    %v40 = vmul.f32 %v29, %v36
    %v41 = vmul.f32 %v40, %v36
    %v42 = vadd.f32 %v39, %v41
    %v43 = vmul.f32 %v42, 0.5
    %vm44 = vcmask 7168
    %v45 = vsel %vm44, %v43, 0.0
    %46 = vadd.xlane.f32.xlu0 %v45
    %v47 = vpop.xlane.xlu0 %46
    %v48 = vrot.slane %v47, 4
    %v49 = vadd.f32 %v47, %v48
    %v50 = vrot.slane %v49, 2
    %v51 = vadd.f32 %v49, %v50
    %v52 = vrot.slane %v51, 1
    %v53 = vadd.f32 %v51, %v52
    %s54 = vtos %v53
    %v55 = vstv %s54
    %56 = vst [vmem:[#allocation5] sm:$0xff] %v55
    // Predicated region
    $region18: #{tpu_custom_call.1} parent=1 // pred_check
      _
    $region19: #{tpu_custom_call.1} parent=1 // pred_check_branch
      %58 = sbr.rel (0) target = $region21
    $region20: #{tpu_custom_call.1} parent=1 // pred_region
      %s60 = ssub.s32 128, 128
      %61 = vsyncadd [#allocation4], %s60
      %s63 = sshll.u32 [#allocation5], 4
      %s64 = int_to_ptr.vmem [resolvable:$true] %s63
      %66 = dma.vmem_to_hbm [thread:$0]  %s64, 128, %s3, [#allocation4]
    $region21: #{tpu_custom_call.1} parent=1 // pred_fallthru
      _
    // Predicated region
    $region22: #{tpu_custom_call.1} parent=1 // pred_check
      _
    $region23: #{tpu_custom_call.1} parent=1 // pred_check_branch
      %68 = sbr.rel (0) target = $region25
    $region24: #{tpu_custom_call.1} parent=1 // pred_region
      %69 = dma.done [#allocation4], 128
    $region25: #{tpu_custom_call.1} parent=1 // pred_fallthru
      _
    %70 = vsyncpa [#allocation3], 1
    %71 = vsyncpa [#allocation4], 1

</llo_original>
